<compile_context>
chip_gen: v7x
topology: tpu7x:2x2x1
jax: 0.10.0
libtpu: 0.0.40
codegen_flags: <defaults>
</compile_context>

<pallas_src>
import functools

import jax
import jax.numpy as jnp
import numpy as np
from jax.experimental import pallas as pl
from jax.experimental.pallas import tpu as pltpu


def _round_up(x, m):
    return ((x + m - 1) // m) * m


def _lqe_kernel(k, reg_max, num_layers, pred_ref, *rest):
    """pred_ref: (TILE_N, 4R) -- natural row-major pred tile.
    rest = (w0, b0, w1, b1, ..., out_ref, pad_sc, stat_sc);
      w_i is (out, in) with the top-k mean already folded into w0,
      b_i is (out, 1),
      out_ref is (1, TILE_N) quality per row (rows on lanes),
      pad_sc is (TILE_N, PD) f32 VMEM staging for the in-kernel transpose,
      stat_sc is (4k, TILE_N) f32 VMEM staging for the MLP input."""
    nw = 2 * num_layers
    weight_refs = rest[:nw]
    out_ref = rest[nw]
    pad_sc = rest[nw + 1]
    stat_sc = rest[nw + 2]

    R = reg_max + 1
    D = 4 * R

    # Stage the tile into the lane-padded scratch and transpose in-VMEM so the
    # rest of the kernel sees bins on sublanes / rows on lanes.  Lanes D..127
    # of pad_sc may hold stale data; the transpose only moves them and rows
    # >= D of xt are never read, so they never enter any arithmetic.
    pad_sc[:, 0:D] = pred_ref[...].astype(jnp.float32)   # masked lane store
    xt = pad_sc[...].T                                    # (PD, TILE_N), XLU vxpose

    NEG = jnp.float32(-1e30)                              # < any (logit - max) value
    for g in range(4):                                    # 4 box sides, static unroll
        logits = xt[g * R:(g + 1) * R, :]                 # (R, TN) sublane slab
        m = jnp.max(logits, axis=0, keepdims=True)        # (1, TN)
        shifted = logits - m                              # (R, TN), <= 0
        e = jnp.exp(shifted)                              # EUP; overlaps top-k below
        s = jnp.sum(e, axis=0, keepdims=True)             # (1, TN) softmax denom
        inv = pl.reciprocal(s, approx=False)              # keep exact-ish (tolerance)

        # Top-k on the shifted logits (exp is monotone -> identical ordering to
        # the softmax probabilities).  Exact ties mask all duplicates at once
        # (value-identical to torch.topk for non-tied float inputs).
        work = shifted
        for j in range(k):
            v = jnp.max(work, axis=0, keepdims=True)      # (1, TN) sublane reduce
            if j < k - 1:
                work = jnp.where(work == v, NEG, work)
            # j-th largest softmax probability of this group for every row;
            # stage directly into the (8,128)-aligned stat scratch (no concat).
            stat_sc[g * k + j:g * k + j + 1, :] = jnp.exp(v) * inv

    # MLP in transposed layout: h = W @ h + b, relu on all but the last layer.
    # The top-k mean row was folded into W0 host-side, so stat is (4k, TN).
    h = stat_sc[...]
    for li in range(num_layers):
        w = weight_refs[2 * li][...]                      # (out, in)
        b = weight_refs[2 * li + 1][...]                  # (out, 1)
        h = jnp.dot(w, h, preferred_element_type=jnp.float32) + b
        if li < num_layers - 1:
            h = jnp.maximum(h, 0.0)

    out_ref[...] = h.astype(out_ref.dtype)                # (1, TN) lane-dense store


def lqe_forward(scores, pred_corners, params, *, k, reg_max, tile_n=None):
    """scores: (B, L, C), pred_corners: (B, L, 4*(reg_max+1)),
    params: list of (weight(out,in), bias(out,)) in PyTorch Linear layout."""
    B, L, _ = scores.shape
    N = B * L
    D = pred_corners.shape[-1]
    R = reg_max + 1
    assert D == 4 * R

    # ---- tile heuristic: large lane-dense tiles; keep the grid EVEN when it
    # has >1 tile so both TensorCores get equal work on v7x. ----------------
    if tile_n is None:
        cap = 2048
        tile_n = max(128, min(cap, _round_up(pl.cdiv(N, 2), 128)))
        nt = pl.cdiv(N, tile_n)
        if nt > 1 and nt % 2 == 1:
            tile_n = max(128, _round_up(pl.cdiv(N, nt + 1), 128))
    assert tile_n % 128 == 0
    n_tiles = pl.cdiv(N, tile_n)
    N_pad = n_tiles * tile_n

    # Natural (rows, bins) layout -- no wrapper-side HBM transpose of pred.
    pred2 = pred_corners.reshape(N, D)
    if N_pad != N:
        pred2 = jnp.pad(pred2, ((0, N_pad - N), (0, 0)))  # padded rows: zero logits

    # ---- fold the per-group top-k mean into layer-0 weights (pure algebra):
    # W0_eff[:, g*k+j] = W0[:, g*(k+1)+j] + W0[:, g*(k+1)+k] / k --------------
    w0 = jnp.asarray(params[0][0], jnp.float32)           # (hidden, 4*(k+1))
    b0 = jnp.asarray(params[0][1], jnp.float32)
    h0 = w0.shape[0]
    w0g = w0.reshape(h0, 4, k + 1)
    w0_eff = (w0g[:, :, :k] + w0g[:, :, k:k + 1] * (1.0 / k)).reshape(h0, 4 * k)
    eff_params = [(w0_eff, b0)] + [
        (jnp.asarray(w, jnp.float32), jnp.asarray(b, jnp.float32))
        for (w, b) in params[1:]
    ]

    num_layers = len(eff_params)
    weight_args, weight_specs = [], []
    for (w, b) in eff_params:
        b2 = b.reshape(-1, 1)                              # (out, 1)
        weight_args += [w, b2]
        weight_specs += [
            pl.BlockSpec(w.shape, lambda i: (0, 0)),       # constant index: resident
            pl.BlockSpec(b2.shape, lambda i: (0, 0)),
        ]

    PD = _round_up(D, 128)                                 # lane-padded transpose width

    mlp_flops = 2 * sum(int(w.size) for w, _ in eff_params)
    cost = pl.CostEstimate(
        flops=int(N_pad * (mlp_flops + (6 + 2 * k) * D)),
        transcendentals=int(N_pad * (D + 4 * k)),
        bytes_accessed=int(N_pad * D * 4 + N_pad * 4 +
                           sum(int(a.size) * 4 for a in weight_args)),
    )

    kernel = functools.partial(_lqe_kernel, k, reg_max, num_layers)
    quality = pl.pallas_call(
        kernel,
        out_shape=jax.ShapeDtypeStruct((1, N_pad), jnp.float32),
        grid=(n_tiles,),
        in_specs=[pl.BlockSpec((tile_n, D), lambda i: (i, 0))] + weight_specs,
        out_specs=pl.BlockSpec((1, tile_n), lambda i: (0, i)),
        scratch_shapes=[pltpu.VMEM((tile_n, PD), jnp.float32),   # transpose staging
                        pltpu.VMEM((4 * k, tile_n), jnp.float32)],  # stat rows
        compiler_params=pltpu.CompilerParams(dimension_semantics=("parallel",)),
        cost_estimate=cost,
    )(pred2, *weight_args)

    quality = quality[0, :N].reshape(B, L, 1)
    return scores + quality.astype(scores.dtype)


def lqe_reference(scores, pred_corners, params, *, k, reg_max):
    """Pure-JAX reference mirroring the PyTorch forward (unfolded weights)."""
    B, L, _ = pred_corners.shape
    prob = jax.nn.softmax(pred_corners.reshape(B, L, 4, reg_max + 1), axis=-1)
    prob_topk, _ = jax.lax.top_k(prob, k)
    stat = jnp.concatenate(
        [prob_topk, prob_topk.mean(axis=-1, keepdims=True)], axis=-1)
    x = stat.reshape(B, L, -1)
    n = len(params)
    for i, (w, b) in enumerate(params):
        x = x @ w.T + b
        if i < n - 1:
            x = jax.nn.relu(x)
    return scores + x


if __name__ == "__main__":
    # Config consistent with LQE(k, hidden_dim, num_layers, reg_max).
    k, hidden_dim, num_layers, reg_max = 2, 32, 2, 7
    B, L, C = 2, 256, 4                    # N = 512 rows -> 2 lane-dense tiles of 256
    D = 4 * (reg_max + 1)                  # 32
    in_dim = 4 * (k + 1)                   # 12

    key = jax.random.PRNGKey(0)
    k_s, k_p, k_w1, k_b1, k_w2, k_b2 = jax.random.split(key, 6)

    scores = jax.random.normal(k_s, (B, L, C), dtype=jnp.float32)
    pred_corners = jax.random.normal(k_p, (B, L, D), dtype=jnp.float32)

    # Deterministic MLP params, PyTorch Linear layout (out, in) / (out,).
    # reg_conf: Linear(in_dim -> hidden_dim) -> ReLU -> Linear(hidden_dim -> 1)
    params = [
        (0.1 * jax.random.normal(k_w1, (hidden_dim, in_dim), dtype=jnp.float32),
         0.1 * jax.random.normal(k_b1, (hidden_dim,), dtype=jnp.float32)),
        (0.1 * jax.random.normal(k_w2, (1, hidden_dim), dtype=jnp.float32),
         0.1 * jax.random.normal(k_b2, (1,), dtype=jnp.float32)),
    ]

    out = lqe_forward(scores, pred_corners, params, k=k, reg_max=reg_max)
    out = jax.block_until_ready(out)

    ref = lqe_reference(scores, pred_corners, params, k=k, reg_max=reg_max)
    np.testing.assert_allclose(np.asarray(out), np.asarray(ref),
                               rtol=1e-5, atol=2e-5)
    print("KERNEL_OK")
</pallas_src>

<mosaic_0001>
module attributes {stable_mosaic.version = 11 : i64} {
  func.func @_lqe_kernel(%arg0: i32, %arg1: memref<256x32xf32, #tpu.memory_space<vmem>>, %arg2: memref<32x8xf32, #tpu.memory_space<vmem>>, %arg3: memref<32x1xf32, #tpu.memory_space<vmem>>, %arg4: memref<1x32xf32, #tpu.memory_space<vmem>>, %arg5: memref<1x1xf32, #tpu.memory_space<vmem>>, %arg6: memref<1x256xf32, #tpu.memory_space<vmem>>, %arg7: memref<256x128xf32, #tpu.memory_space<vmem>>, %arg8: memref<8x256xf32, #tpu.memory_space<vmem>>) attributes {dimension_semantics = [#tpu.dimension_semantics<parallel>], iteration_bounds = array<i64: 2>, scalar_prefetch = 0 : i64, scratch_operands = 2 : i64, tpu.core_type = #tpu.core_type<tc>, window_params = [{transform_indices = @transform_0, window_bounds = array<i64: 256, 32>}, {pipeline_mode = #tpu.pipeline_mode<synchronous>, transform_indices = @transform_1, window_bounds = array<i64: 32, 8>}, {pipeline_mode = #tpu.pipeline_mode<synchronous>, transform_indices = @transform_2, window_bounds = array<i64: 32, 1>}, {pipeline_mode = #tpu.pipeline_mode<synchronous>, transform_indices = @transform_3, window_bounds = array<i64: 1, 32>}, {pipeline_mode = #tpu.pipeline_mode<synchronous>, transform_indices = @transform_4, window_bounds = array<i64: 1, 1>}, {transform_indices = @transform_5, window_bounds = array<i64: 1, 256>}]} {
    %c0 = arith.constant 0 : index
    %c0_0 = arith.constant 0 : index
    %0 = vector.load %arg1[%c0, %c0_0] : memref<256x32xf32, #tpu.memory_space<vmem>>, vector<256x32xf32>
    %c0_1 = arith.constant 0 : index
    %c0_2 = arith.constant 0 : index
    %1 = vector.load %arg7[%c0_1, %c0_2] : memref<256x128xf32, #tpu.memory_space<vmem>>, vector<256x32xf32>
    tpu.vector_store %arg7[%c0_1, %c0_2], %0 {strides = array<i32>} : memref<256x128xf32, #tpu.memory_space<vmem>>, vector<256x32xf32>,
    %c0_3 = arith.constant 0 : index
    %c0_4 = arith.constant 0 : index
    %2 = vector.load %arg7[%c0_3, %c0_4] : memref<256x128xf32, #tpu.memory_space<vmem>>, vector<256x128xf32>
    %3 = tpu.transpose %2, [1, 0] : vector<256x128xf32> -> vector<128x256xf32>
    %4 = vector.extract_strided_slice %3 {offsets = [0, 0], sizes = [8, 256], strides = [1, 1]} : vector<128x256xf32> to vector<8x256xf32>
    %cst = arith.constant dense<0xFF800000> : vector<256xf32>
    %5 = vector.multi_reduction <maximumf>, %4, %cst [0] : vector<8x256xf32> to vector<256xf32>
    %6 = vector.shape_cast %5 : vector<256xf32> to vector<1x256xf32>
    %7 = vector.broadcast %6 : vector<1x256xf32> to vector<8x256xf32>
    %8 = arith.subf %4, %7 : vector<8x256xf32>
    %9 = math.exp %8 : vector<8x256xf32>
    %cst_5 = arith.constant dense<0.000000e+00> : vector<256xf32>
    %10 = vector.multi_reduction <add>, %9, %cst_5 [0] : vector<8x256xf32> to vector<256xf32>
    %11 = vector.shape_cast %10 : vector<256xf32> to vector<1x256xf32>
    %12 = tpu.reciprocal %11 : vector<1x256xf32> -> vector<1x256xf32>
    %cst_6 = arith.constant dense<0xFF800000> : vector<256xf32>
    %13 = vector.multi_reduction <maximumf>, %8, %cst_6 [0] : vector<8x256xf32> to vector<256xf32>
    %14 = vector.shape_cast %13 : vector<256xf32> to vector<1x256xf32>
    %15 = vector.broadcast %14 : vector<1x256xf32> to vector<8x256xf32>
    %16 = arith.cmpf oeq, %8, %15 : vector<8x256xf32>
    %cst_7 = arith.constant -1.000000e+30 : f32
    %17 = vector.broadcast %cst_7 : f32 to vector<8x256xf32>
    %18 = arith.select %16, %17, %8 : vector<8x256xi1>, vector<8x256xf32>
    %19 = math.exp %14 : vector<1x256xf32>
    %20 = arith.mulf %19, %12 : vector<1x256xf32>
    %c0_8 = arith.constant 0 : index
    %c0_9 = arith.constant 0 : index
    %21 = vector.load %arg8[%c0_8, %c0_9] : memref<8x256xf32, #tpu.memory_space<vmem>>, vector<1x256xf32>
    tpu.vector_store %arg8[%c0_8, %c0_9], %20 {strides = array<i32>} : memref<8x256xf32, #tpu.memory_space<vmem>>, vector<1x256xf32>,
    %cst_10 = arith.constant dense<0xFF800000> : vector<256xf32>
    %22 = vector.multi_reduction <maximumf>, %18, %cst_10 [0] : vector<8x256xf32> to vector<256xf32>
    %23 = vector.shape_cast %22 : vector<256xf32> to vector<1x256xf32>
    %24 = math.exp %23 : vector<1x256xf32>
    %25 = arith.mulf %24, %12 : vector<1x256xf32>
    %c1 = arith.constant 1 : index
    %c0_11 = arith.constant 0 : index
    %26 = vector.load %arg8[%c1, %c0_11] : memref<8x256xf32, #tpu.memory_space<vmem>>, vector<1x256xf32>
    tpu.vector_store %arg8[%c1, %c0_11], %25 {strides = array<i32>} : memref<8x256xf32, #tpu.memory_space<vmem>>, vector<1x256xf32>,
    %27 = vector.extract_strided_slice %3 {offsets = [8, 0], sizes = [8, 256], strides = [1, 1]} : vector<128x256xf32> to vector<8x256xf32>
    %cst_12 = arith.constant dense<0xFF800000> : vector<256xf32>
    %28 = vector.multi_reduction <maximumf>, %27, %cst_12 [0] : vector<8x256xf32> to vector<256xf32>
    %29 = vector.shape_cast %28 : vector<256xf32> to vector<1x256xf32>
    %30 = vector.broadcast %29 : vector<1x256xf32> to vector<8x256xf32>
    %31 = arith.subf %27, %30 : vector<8x256xf32>
    %32 = math.exp %31 : vector<8x256xf32>
    %cst_13 = arith.constant dense<0.000000e+00> : vector<256xf32>
    %33 = vector.multi_reduction <add>, %32, %cst_13 [0] : vector<8x256xf32> to vector<256xf32>
    %34 = vector.shape_cast %33 : vector<256xf32> to vector<1x256xf32>
    %35 = tpu.reciprocal %34 : vector<1x256xf32> -> vector<1x256xf32>
    %cst_14 = arith.constant dense<0xFF800000> : vector<256xf32>
    %36 = vector.multi_reduction <maximumf>, %31, %cst_14 [0] : vector<8x256xf32> to vector<256xf32>
    %37 = vector.shape_cast %36 : vector<256xf32> to vector<1x256xf32>
    %38 = vector.broadcast %37 : vector<1x256xf32> to vector<8x256xf32>
    %39 = arith.cmpf oeq, %31, %38 : vector<8x256xf32>
    %cst_15 = arith.constant -1.000000e+30 : f32
    %40 = vector.broadcast %cst_15 : f32 to vector<8x256xf32>
    %41 = arith.select %39, %40, %31 : vector<8x256xi1>, vector<8x256xf32>
    %42 = math.exp %37 : vector<1x256xf32>
    %43 = arith.mulf %42, %35 : vector<1x256xf32>
    %c2 = arith.constant 2 : index
    %c0_16 = arith.constant 0 : index
    %44 = vector.load %arg8[%c2, %c0_16] : memref<8x256xf32, #tpu.memory_space<vmem>>, vector<1x256xf32>
    tpu.vector_store %arg8[%c2, %c0_16], %43 {strides = array<i32>} : memref<8x256xf32, #tpu.memory_space<vmem>>, vector<1x256xf32>,
    %cst_17 = arith.constant dense<0xFF800000> : vector<256xf32>
    %45 = vector.multi_reduction <maximumf>, %41, %cst_17 [0] : vector<8x256xf32> to vector<256xf32>
    %46 = vector.shape_cast %45 : vector<256xf32> to vector<1x256xf32>
    %47 = math.exp %46 : vector<1x256xf32>
    %48 = arith.mulf %47, %35 : vector<1x256xf32>
    %c3 = arith.constant 3 : index
    %c0_18 = arith.constant 0 : index
    %49 = vector.load %arg8[%c3, %c0_18] : memref<8x256xf32, #tpu.memory_space<vmem>>, vector<1x256xf32>
    tpu.vector_store %arg8[%c3, %c0_18], %48 {strides = array<i32>} : memref<8x256xf32, #tpu.memory_space<vmem>>, vector<1x256xf32>,
    %50 = vector.extract_strided_slice %3 {offsets = [16, 0], sizes = [8, 256], strides = [1, 1]} : vector<128x256xf32> to vector<8x256xf32>
    %cst_19 = arith.constant dense<0xFF800000> : vector<256xf32>
    %51 = vector.multi_reduction <maximumf>, %50, %cst_19 [0] : vector<8x256xf32> to vector<256xf32>
    %52 = vector.shape_cast %51 : vector<256xf32> to vector<1x256xf32>
    %53 = vector.broadcast %52 : vector<1x256xf32> to vector<8x256xf32>
    %54 = arith.subf %50, %53 : vector<8x256xf32>
    %55 = math.exp %54 : vector<8x256xf32>
    %cst_20 = arith.constant dense<0.000000e+00> : vector<256xf32>
    %56 = vector.multi_reduction <add>, %55, %cst_20 [0] : vector<8x256xf32> to vector<256xf32>
    %57 = vector.shape_cast %56 : vector<256xf32> to vector<1x256xf32>
    %58 = tpu.reciprocal %57 : vector<1x256xf32> -> vector<1x256xf32>
    %cst_21 = arith.constant dense<0xFF800000> : vector<256xf32>
    %59 = vector.multi_reduction <maximumf>, %54, %cst_21 [0] : vector<8x256xf32> to vector<256xf32>
    %60 = vector.shape_cast %59 : vector<256xf32> to vector<1x256xf32>
    %61 = vector.broadcast %60 : vector<1x256xf32> to vector<8x256xf32>
    %62 = arith.cmpf oeq, %54, %61 : vector<8x256xf32>
    %cst_22 = arith.constant -1.000000e+30 : f32
    %63 = vector.broadcast %cst_22 : f32 to vector<8x256xf32>
    %64 = arith.select %62, %63, %54 : vector<8x256xi1>, vector<8x256xf32>
    %65 = math.exp %60 : vector<1x256xf32>
    %66 = arith.mulf %65, %58 : vector<1x256xf32>
    %c4 = arith.constant 4 : index
    %c0_23 = arith.constant 0 : index
    %67 = vector.load %arg8[%c4, %c0_23] : memref<8x256xf32, #tpu.memory_space<vmem>>, vector<1x256xf32>
    tpu.vector_store %arg8[%c4, %c0_23], %66 {strides = array<i32>} : memref<8x256xf32, #tpu.memory_space<vmem>>, vector<1x256xf32>,
    %cst_24 = arith.constant dense<0xFF800000> : vector<256xf32>
    %68 = vector.multi_reduction <maximumf>, %64, %cst_24 [0] : vector<8x256xf32> to vector<256xf32>
    %69 = vector.shape_cast %68 : vector<256xf32> to vector<1x256xf32>
    %70 = math.exp %69 : vector<1x256xf32>
    %71 = arith.mulf %70, %58 : vector<1x256xf32>
    %c5 = arith.constant 5 : index
    %c0_25 = arith.constant 0 : index
    %72 = vector.load %arg8[%c5, %c0_25] : memref<8x256xf32, #tpu.memory_space<vmem>>, vector<1x256xf32>
    tpu.vector_store %arg8[%c5, %c0_25], %71 {strides = array<i32>} : memref<8x256xf32, #tpu.memory_space<vmem>>, vector<1x256xf32>,
    %73 = vector.extract_strided_slice %3 {offsets = [24, 0], sizes = [8, 256], strides = [1, 1]} : vector<128x256xf32> to vector<8x256xf32>
    %cst_26 = arith.constant dense<0xFF800000> : vector<256xf32>
    %74 = vector.multi_reduction <maximumf>, %73, %cst_26 [0] : vector<8x256xf32> to vector<256xf32>
    %75 = vector.shape_cast %74 : vector<256xf32> to vector<1x256xf32>
    %76 = vector.broadcast %75 : vector<1x256xf32> to vector<8x256xf32>
    %77 = arith.subf %73, %76 : vector<8x256xf32>
    %78 = math.exp %77 : vector<8x256xf32>
    %cst_27 = arith.constant dense<0.000000e+00> : vector<256xf32>
    %79 = vector.multi_reduction <add>, %78, %cst_27 [0] : vector<8x256xf32> to vector<256xf32>
    %80 = vector.shape_cast %79 : vector<256xf32> to vector<1x256xf32>
    %81 = tpu.reciprocal %80 : vector<1x256xf32> -> vector<1x256xf32>
    %cst_28 = arith.constant dense<0xFF800000> : vector<256xf32>
    %82 = vector.multi_reduction <maximumf>, %77, %cst_28 [0] : vector<8x256xf32> to vector<256xf32>
    %83 = vector.shape_cast %82 : vector<256xf32> to vector<1x256xf32>
    %84 = vector.broadcast %83 : vector<1x256xf32> to vector<8x256xf32>
    %85 = arith.cmpf oeq, %77, %84 : vector<8x256xf32>
    %cst_29 = arith.constant -1.000000e+30 : f32
    %86 = vector.broadcast %cst_29 : f32 to vector<8x256xf32>
    %87 = arith.select %85, %86, %77 : vector<8x256xi1>, vector<8x256xf32>
    %88 = math.exp %83 : vector<1x256xf32>
    %89 = arith.mulf %88, %81 : vector<1x256xf32>
    %c6 = arith.constant 6 : index
    %c0_30 = arith.constant 0 : index
    %90 = vector.load %arg8[%c6, %c0_30] : memref<8x256xf32, #tpu.memory_space<vmem>>, vector<1x256xf32>
    tpu.vector_store %arg8[%c6, %c0_30], %89 {strides = array<i32>} : memref<8x256xf32, #tpu.memory_space<vmem>>, vector<1x256xf32>,
    %cst_31 = arith.constant dense<0xFF800000> : vector<256xf32>
    %91 = vector.multi_reduction <maximumf>, %87, %cst_31 [0] : vector<8x256xf32> to vector<256xf32>
    %92 = vector.shape_cast %91 : vector<256xf32> to vector<1x256xf32>
    %93 = math.exp %92 : vector<1x256xf32>
    %94 = arith.mulf %93, %81 : vector<1x256xf32>
    %c7 = arith.constant 7 : index
    %c0_32 = arith.constant 0 : index
    %95 = vector.load %arg8[%c7, %c0_32] : memref<8x256xf32, #tpu.memory_space<vmem>>, vector<1x256xf32>
    tpu.vector_store %arg8[%c7, %c0_32], %94 {strides = array<i32>} : memref<8x256xf32, #tpu.memory_space<vmem>>, vector<1x256xf32>,
    %c0_33 = arith.constant 0 : index
    %c0_34 = arith.constant 0 : index
    %96 = vector.load %arg8[%c0_33, %c0_34] : memref<8x256xf32, #tpu.memory_space<vmem>>, vector<8x256xf32>
    %c0_35 = arith.constant 0 : index
    %c0_36 = arith.constant 0 : index
    %97 = vector.load %arg2[%c0_35, %c0_36] : memref<32x8xf32, #tpu.memory_space<vmem>>, vector<32x8xf32>
    %c0_37 = arith.constant 0 : index
    %c0_38 = arith.constant 0 : index
    %98 = vector.load %arg3[%c0_37, %c0_38] : memref<32x1xf32, #tpu.memory_space<vmem>>, vector<32x1xf32>
    %cst_39 = arith.constant dense<0.000000e+00> : vector<32x256xf32>
    %99 = tpu.matmul %97, %96, %cst_39 {dimension_numbers = #tpu.dot_dimension_numbers<[1], [0], [0], [1], [0, 0, 1, 1], [], []>} : vector<32x8xf32>, vector<8x256xf32>, vector<32x256xf32> -> vector<32x256xf32>
    %100 = vector.broadcast %98 : vector<32x1xf32> to vector<32x256xf32>
    %101 = arith.addf %99, %100 : vector<32x256xf32>
    %cst_40 = arith.constant 0.000000e+00 : f32
    %102 = vector.broadcast %cst_40 : f32 to vector<32x256xf32>
    %103 = arith.maximumf %101, %102 : vector<32x256xf32>
    %c0_41 = arith.constant 0 : index
    %c0_42 = arith.constant 0 : index
    %104 = vector.load %arg4[%c0_41, %c0_42] : memref<1x32xf32, #tpu.memory_space<vmem>>, vector<1x32xf32>
    %c0_43 = arith.constant 0 : index
    %c0_44 = arith.constant 0 : index
    %105 = vector.load %arg5[%c0_43, %c0_44] : memref<1x1xf32, #tpu.memory_space<vmem>>, vector<1x1xf32>
    %cst_45 = arith.constant dense<0.000000e+00> : vector<1x256xf32>
    %106 = tpu.matmul %104, %103, %cst_45 {dimension_numbers = #tpu.dot_dimension_numbers<[1], [0], [0], [1], [0, 0, 1, 1], [], []>} : vector<1x32xf32>, vector<32x256xf32>, vector<1x256xf32> -> vector<1x256xf32>
    %107 = vector.broadcast %105 : vector<1x1xf32> to vector<1x256xf32>
    %108 = arith.addf %106, %107 : vector<1x256xf32>
    %c0_46 = arith.constant 0 : index
    %c0_47 = arith.constant 0 : index
    %109 = vector.load %arg6[%c0_46, %c0_47] : memref<1x256xf32, #tpu.memory_space<vmem>>, vector<1x256xf32>
    tpu.vector_store %arg6[%c0_46, %c0_47], %108 {strides = array<i32>} : memref<1x256xf32, #tpu.memory_space<vmem>>, vector<1x256xf32>,
    return
  }
  func.func @transform_0(%arg0: i32) -> (i32, i32) {
    %c0_i32 = arith.constant 0 : i32
    %c0_i32_0 = arith.constant 0 : i32
    return %arg0, %c0_i32 : i32, i32
  }
  func.func @transform_1(%arg0: i32) -> (i32, i32) {
    %c0_i32 = arith.constant 0 : i32
    %c0_i32_0 = arith.constant 0 : i32
    %c0_i32_1 = arith.constant 0 : i32
    return %c0_i32, %c0_i32_0 : i32, i32
  }
  func.func @transform_2(%arg0: i32) -> (i32, i32) {
    %c0_i32 = arith.constant 0 : i32
    %c0_i32_0 = arith.constant 0 : i32
    %c0_i32_1 = arith.constant 0 : i32
    return %c0_i32, %c0_i32_0 : i32, i32
  }
  func.func @transform_3(%arg0: i32) -> (i32, i32) {
    %c0_i32 = arith.constant 0 : i32
    %c0_i32_0 = arith.constant 0 : i32
    %c0_i32_1 = arith.constant 0 : i32
    return %c0_i32, %c0_i32_0 : i32, i32
  }
  func.func @transform_4(%arg0: i32) -> (i32, i32) {
    %c0_i32 = arith.constant 0 : i32
    %c0_i32_0 = arith.constant 0 : i32
    %c0_i32_1 = arith.constant 0 : i32
    return %c0_i32, %c0_i32_0 : i32, i32
  }
  func.func @transform_5(%arg0: i32) -> (i32, i32) {
    %c0_i32 = arith.constant 0 : i32
    %c0_i32_0 = arith.constant 0 : i32
    return %c0_i32, %arg0 : i32, i32
  }
}

</mosaic_0001>

<llo_original>
// kernel: tpu_custom_call.1
$region0: #{tpu_custom_call.1}
  #allocation0 [shape = 'u32[]', space=smem, size = 0x4, offset = 0x4, fixed_abs, tag = 'smem constant byte address 0x4 - core index']
  #allocation1 [shape = 'u32[144,128]{1,0:T(1,128)}', space=vmem, size = 0x12000, scoped, tag = 'internal scratch']
  #allocation2 [shape = 'f32[256,128]{1,0:T(8,128)}', space=vmem, size = 0x20000, scoped, tag = 'scratch operand']
  #allocation3 [shape = 'f32[8,256]{1,0:T(8,128)}', space=vmem, size = 0x2000, scoped, tag = 'scratch operand']
  #allocation4 [shape = 'f32[1,1]{1,0:T(1,128)S(1)}', space=vmem, size = 0x200, scoped, tag = 'scoped memory for tpu_custom_call.1']
  %s0 = inlined_call_operand.vmem [shape: f32[512,32], index: 0, kind: input, shape index: {}]
  %s1 = inlined_call_operand.vmem [shape: f32[32,8], index: 1, kind: input, shape index: {}]
  %s2 = inlined_call_operand.vmem [shape: f32[32,1], index: 2, kind: input, shape index: {}]
  %s3 = inlined_call_operand.vmem [shape: f32[1,32], index: 3, kind: input, shape index: {}]
  %s4 = inlined_call_operand.<no memory space> [shape: f32[1,1], index: 4, kind: input, shape index: {}]
  %s5 = inlined_call_operand.hbm [shape: f32[1,512], index: 5, kind: output, shape index: {}]
  %s6 = sld [smem:[#allocation0]]
  $region53: #{tpu_custom_call.1} parent=0
    _
  %s8 = ssub.s32 1, %s6
  %s9 = scalar_select 0, %s8, %s6
  %v10 = vstv %s4
  %11 = vst [vmem:[#allocation4] sm:$0x1] %v10
  $region1: #{tpu_custom_call.1} parent=0
    #allocation5 [shape = 'u8[2048]{0}', space=vmem, size = 0x800, scoped, tag = 'output window, operand 0']
    #allocation6 [shape = 's32[2]{0}', space=sflag, size = 0x8, scoped, tag = 'scoped memory for tpu_custom_call.1']
    %12 = vsyncpa [#allocation6], 0
    %s13 = scalar_lea.sflag [#allocation6], 1
    %14 = vsyncpa %s13, 0
    loop: start=0, step=1, limit=4
    $region2: #{tpu_custom_call.1} parent=1 // loop_pre_header
      _
    $region3: #{tpu_custom_call.1} parent=1 // loop_header
      %s16 = sphi 0, %s20
      %p17 = scmp.ge.s32.totalorder %s16, 4
      %s26 = sphi 0, %s28
      %s29 = sphi 0, %s26
      %s30 = sphi 0, %s29
      %s46 = sphi 0, %s30
      %s50 = sphi 0, %s50
      %s52 = sphi 0, %s50
      %s53 = sphi 0, %s52
      %s67 = sphi 0, %s53
      %s71 = sphi 0, %s71
      %s73 = sphi 0, %s71
      %s74 = sphi 0, %s73
      %s88 = sphi 0, %s74
      %s92 = sphi 0, %s92
      %s94 = sphi 0, %s92
      %s95 = sphi 0, %s94
      %s109 = sphi 0, %s95
      %s113 = sphi 0, %s113
      %s115 = sphi 0, %s113
      %s116 = sphi 0, %s115
      %s130 = sphi 0, %s116
      %s136 = sphi 0, %s138
      %s139 = sphi 0, %s136
      %s140 = sphi 0, %s139
      %s156 = sphi 0, %s140
    $region4: #{tpu_custom_call.1} parent=1 // loop_header_branch
      %19 = sbr.rel (%p17) target = $region8
    $region5: #{tpu_custom_call.1} parent=1 // loop_body
      %s21 = ssub.s32 %s16, 1
      %s22 = ssub.s32 %s16, 2
      %s23 = sadd.s32 %s16, 1
      %s24 = ssub.s32 %s16, %s23
      %p25 = scmp.eq.s32.totalorder %s24, 0
      %s27 = sadd.s32 %s26, 1
      %s28 = scalar_select %p25, %s26, %s27
      %p31 = pneg %p25
      %p32 = scmp.eq.s32.totalorder %s16, 1
      %p33 = por %p31, %p32
      %p34 = scmp.ne.s32.totalorder %s26, %s29
      %p35 = scmp.eq.s32.totalorder %s16, 0
      %p36 = por %p34, %p35
      %p37 = scmp.ne.s32.totalorder %s26, %s29
      %p38 = scmp.eq.s32.totalorder %s21, 1
      %p39 = por %p37, %p38
      %p40 = scmp.ne.s32.totalorder %s29, %s30
      %p41 = scmp.eq.s32.totalorder %s21, 0
      %p42 = por %p40, %p41
      %p43 = scmp.ne.s32.totalorder %s29, %s30
      %p44 = scmp.eq.s32.totalorder %s22, 1
      %p45 = por %p43, %p44
      %p47 = scmp.ne.s32.totalorder %s30, %s46
      %p48 = scmp.eq.s32.totalorder %s22, 0
      %p49 = por %p47, %p48
      %s51 = sadd.s32 %s50, 1
      %p54 = scmp.eq.s32.totalorder %s16, 1
      %p55 = scmp.ne.s32.totalorder %s50, %s52
      %p56 = scmp.eq.s32.totalorder %s16, 0
      %p57 = por %p55, %p56
      %p58 = scmp.ne.s32.totalorder %s50, %s52
      %p59 = scmp.eq.s32.totalorder %s21, 1
      %p60 = por %p58, %p59
      %p61 = scmp.ne.s32.totalorder %s52, %s53
      %p62 = scmp.eq.s32.totalorder %s21, 0
      %p63 = por %p61, %p62
      %p64 = scmp.ne.s32.totalorder %s52, %s53
      %p65 = scmp.eq.s32.totalorder %s22, 1
      %p66 = por %p64, %p65
      %p68 = scmp.ne.s32.totalorder %s53, %s67
      %p69 = scmp.eq.s32.totalorder %s22, 0
      %p70 = por %p68, %p69
      %s72 = sadd.s32 %s71, 1
      %p75 = scmp.eq.s32.totalorder %s16, 1
      %p76 = scmp.ne.s32.totalorder %s71, %s73
      %p77 = scmp.eq.s32.totalorder %s16, 0
      %p78 = por %p76, %p77
      %p79 = scmp.ne.s32.totalorder %s71, %s73
      %p80 = scmp.eq.s32.totalorder %s21, 1
      %p81 = por %p79, %p80
      %p82 = scmp.ne.s32.totalorder %s73, %s74
      %p83 = scmp.eq.s32.totalorder %s21, 0
      %p84 = por %p82, %p83
      %p85 = scmp.ne.s32.totalorder %s73, %s74
      %p86 = scmp.eq.s32.totalorder %s22, 1
      %p87 = por %p85, %p86
      %p89 = scmp.ne.s32.totalorder %s74, %s88
      %p90 = scmp.eq.s32.totalorder %s22, 0
      %p91 = por %p89, %p90
      %s93 = sadd.s32 %s92, 1
      %p96 = scmp.eq.s32.totalorder %s16, 1
      %p97 = scmp.ne.s32.totalorder %s92, %s94
      %p98 = scmp.eq.s32.totalorder %s16, 0
      %p99 = por %p97, %p98
      %p100 = scmp.ne.s32.totalorder %s92, %s94
      %p101 = scmp.eq.s32.totalorder %s21, 1
      %p102 = por %p100, %p101
      %p103 = scmp.ne.s32.totalorder %s94, %s95
      %p104 = scmp.eq.s32.totalorder %s21, 0
      %p105 = por %p103, %p104
      %p106 = scmp.ne.s32.totalorder %s94, %s95
      %p107 = scmp.eq.s32.totalorder %s22, 1
      %p108 = por %p106, %p107
      %p110 = scmp.ne.s32.totalorder %s95, %s109
      %p111 = scmp.eq.s32.totalorder %s22, 0
      %p112 = por %p110, %p111
      %s114 = sadd.s32 %s113, 1
      %p117 = scmp.eq.s32.totalorder %s16, 1
      %p118 = scmp.ne.s32.totalorder %s113, %s115
      %p119 = scmp.eq.s32.totalorder %s16, 0
      %p120 = por %p118, %p119
      %p121 = scmp.ne.s32.totalorder %s113, %s115
      %p122 = scmp.eq.s32.totalorder %s21, 1
      %p123 = por %p121, %p122
      %p124 = scmp.ne.s32.totalorder %s115, %s116
      %p125 = scmp.eq.s32.totalorder %s21, 0
      %p126 = por %p124, %p125
      %p127 = scmp.ne.s32.totalorder %s115, %s116
      %p128 = scmp.eq.s32.totalorder %s22, 1
      %p129 = por %p127, %p128
      %p131 = scmp.ne.s32.totalorder %s116, %s130
      %p132 = scmp.eq.s32.totalorder %s22, 0
      %p133 = por %p131, %p132
      %s134 = ssub.s32 %s16, %s23
      %p135 = scmp.eq.s32.totalorder %s134, 0
      %s137 = sadd.s32 %s136, 1
      %s138 = scalar_select %p135, %s136, %s137
      %p141 = pneg %p135
      %p142 = scmp.eq.s32.totalorder %s16, 1
      %p143 = por %p141, %p142
      %p144 = scmp.ne.s32.totalorder %s136, %s139
      %p145 = scmp.eq.s32.totalorder %s16, 0
      %p146 = por %p144, %p145
      %p147 = scmp.ne.s32.totalorder %s136, %s139
      %p148 = scmp.eq.s32.totalorder %s21, 1
      %p149 = por %p147, %p148
      %p150 = scmp.ne.s32.totalorder %s139, %s140
      %p151 = scmp.eq.s32.totalorder %s21, 0
      %p152 = por %p150, %p151
      %p153 = scmp.ne.s32.totalorder %s139, %s140
      %p154 = scmp.eq.s32.totalorder %s22, 1
      %p155 = por %p153, %p154
      %p157 = scmp.ne.s32.totalorder %s140, %s156
      %p158 = scmp.eq.s32.totalorder %s22, 0
      %p159 = por %p157, %p158
      %p160 = scmp.le.s32.totalorder 1, %s16
      %p161 = scmp.lt.s32.totalorder %s16, 3
      %p162 = pnand %p160, %p161
      %p163 = pneg %p162
      // Predicated region
      $region9: #{tpu_custom_call.1} parent=5 // pred_check
        _
      $region10: #{tpu_custom_call.1} parent=5 // pred_check_branch
        %165 = sbr.rel (%p162) target = $region12
      $region11: #{tpu_custom_call.1} parent=5 // pred_region
        %s166 = ssub.s32 %s16, 1
        // Predicated region
        $region13: #{tpu_custom_call.1} parent=11 // pred_check
          %p167 = pneg %p63
        $region14: #{tpu_custom_call.1} parent=11 // pred_check_branch
          %169 = sbr.rel (%p167) target = $region16
        $region15: #{tpu_custom_call.1} parent=11 // pred_region
          _
        $region16: #{tpu_custom_call.1} parent=11 // pred_fallthru
          _
        // Predicated region
        $region17: #{tpu_custom_call.1} parent=11 // pred_check
          %p170 = pneg %p84
        $region18: #{tpu_custom_call.1} parent=11 // pred_check_branch
          %172 = sbr.rel (%p170) target = $region20
        $region19: #{tpu_custom_call.1} parent=11 // pred_region
          _
        $region20: #{tpu_custom_call.1} parent=11 // pred_fallthru
          _
        // Predicated region
        $region21: #{tpu_custom_call.1} parent=11 // pred_check
          %p173 = pneg %p105
        $region22: #{tpu_custom_call.1} parent=11 // pred_check_branch
          %175 = sbr.rel (%p173) target = $region24
        $region23: #{tpu_custom_call.1} parent=11 // pred_region
          _
        $region24: #{tpu_custom_call.1} parent=11 // pred_fallthru
          _
        // Predicated region
        $region25: #{tpu_custom_call.1} parent=11 // pred_check
          %p176 = pneg %p126
        $region26: #{tpu_custom_call.1} parent=11 // pred_check_branch
          %178 = sbr.rel (%p176) target = $region28
        $region27: #{tpu_custom_call.1} parent=11 // pred_region
          _
        $region28: #{tpu_custom_call.1} parent=11 // pred_fallthru
          _
      $region12: #{tpu_custom_call.1} parent=5 // pred_fallthru
        _
      %p179 = scmp.lt.s32.totalorder %s16, 2
      // Predicated region
      $region29: #{tpu_custom_call.1} parent=5 // pred_check
        %p180 = pneg %p179
      $region30: #{tpu_custom_call.1} parent=5 // pred_check_branch
        %182 = sbr.rel (%p180) target = $region32
      $region31: #{tpu_custom_call.1} parent=5 // pred_region
        // Predicated region
        $region33: #{tpu_custom_call.1} parent=31 // pred_check
          %p183 = pneg %p36
        $region34: #{tpu_custom_call.1} parent=31 // pred_check_branch
          %185 = sbr.rel (%p183) target = $region36
        $region35: #{tpu_custom_call.1} parent=31 // pred_region
          %s186 = smul.u32 32, %s16
          %p187 = scmp.lt.s32.totalorder %s186, 63
          %s188 = scalar_select %p187, %s186, 63
          %s189 = smul.addr %s188, 8
          %s190 = scalar_lea.vmem %s0, %s189
          %s191 = smul.u32 32, %s16
        $region36: #{tpu_custom_call.1} parent=31 // pred_fallthru
          _
      $region32: #{tpu_custom_call.1} parent=5 // pred_fallthru
        _
      %p192 = scmp.le.s32.totalorder 1, %s16
      %p193 = scmp.lt.s32.totalorder %s16, 3
      %p194 = pnand %p192, %p193
      %p195 = pneg %p194
      // Predicated region
      $region37: #{tpu_custom_call.1} parent=5 // pred_check
        _
      $region38: #{tpu_custom_call.1} parent=5 // pred_check_branch
        %197 = sbr.rel (%p194) target = $region40
      $region39: #{tpu_custom_call.1} parent=5 // pred_region
        %s198 = ssub.s32 %s16, 1
        %s199 = smul.u32 32, %s21
        %p200 = scmp.lt.s32.totalorder %s199, 63
        %s201 = scalar_select %p200, %s199, 63
        %s202 = smul.addr %s201, 8
        %s203 = scalar_lea.vmem %s0, %s202
        %p204 = pneg %p42
        %p205 = pneg %p39
        %p206 = pneg %p63
        %p207 = pneg %p60
        %p208 = pneg %p84
        %p209 = pneg %p81
        %p210 = pneg %p105
        %p211 = pneg %p102
        %p212 = pneg %p126
        %p213 = pneg %p123
        %p214 = pneg %p152
        %p215 = pneg %p149
        %s216 = sand.u32 %s139, 1
        %s217 = scalar_lea.sflag [#allocation6], %s216
        %s218 = sand.u32 %s139, 1
        %s219 = smul.addr %s218, 2
        %s220 = scalar_lea.vmem [#allocation5], %s219
        %s221 = smul.u32 32, %s21
        %p222 = scmp.lt.s32.totalorder %s221, 63
        %s223 = scalar_select %p222, %s221, 63
        %s224 = smul.addr %s223, 8
        %s225 = scalar_lea.vmem %s0, %s224
        %s226 = smul.u32 32, %s21
        %s227 = smul.u32 2, %s21
        %v228 = vld [vmem:[%s225] sm:$0xff]
        %v229 = vld [vmem:[%s225 + $0x8] sm:$0xff]
        %v230 = vld [vmem:[%s225 + $0x10] sm:$0xff]
        %v231 = vld [vmem:[%s225 + $0x18] sm:$0xff]
        %v232 = vld [vmem:[%s225 + $0x20] sm:$0xff]
        %v233 = vld [vmem:[%s225 + $0x28] sm:$0xff]
        %v234 = vld [vmem:[%s225 + $0x30] sm:$0xff]
        %v235 = vld [vmem:[%s225 + $0x38] sm:$0xff]
        %v236 = vld [vmem:[%s225 + $0x40] sm:$0xff]
        %v237 = vld [vmem:[%s225 + $0x48] sm:$0xff]
        %v238 = vld [vmem:[%s225 + $0x50] sm:$0xff]
        %v239 = vld [vmem:[%s225 + $0x58] sm:$0xff]
        %v240 = vld [vmem:[%s225 + $0x60] sm:$0xff]
        %v241 = vld [vmem:[%s225 + $0x68] sm:$0xff]
        %v242 = vld [vmem:[%s225 + $0x70] sm:$0xff]
        %v243 = vld [vmem:[%s225 + $0x78] sm:$0xff]
        %v244 = vld [vmem:[%s225 + $0x80] sm:$0xff]
        %v245 = vld [vmem:[%s225 + $0x88] sm:$0xff]
        %v246 = vld [vmem:[%s225 + $0x90] sm:$0xff]
        %v247 = vld [vmem:[%s225 + $0x98] sm:$0xff]
        %v248 = vld [vmem:[%s225 + $0xa0] sm:$0xff]
        %v249 = vld [vmem:[%s225 + $0xa8] sm:$0xff]
        %v250 = vld [vmem:[%s225 + $0xb0] sm:$0xff]
        %v251 = vld [vmem:[%s225 + $0xb8] sm:$0xff]
        %v252 = vld [vmem:[%s225 + $0xc0] sm:$0xff]
        %v253 = vld [vmem:[%s225 + $0xc8] sm:$0xff]
        %v254 = vld [vmem:[%s225 + $0xd0] sm:$0xff]
        %v255 = vld [vmem:[%s225 + $0xd8] sm:$0xff]
        %v256 = vld [vmem:[%s225 + $0xe0] sm:$0xff]
        %v257 = vld [vmem:[%s225 + $0xe8] sm:$0xff]
        %v258 = vld [vmem:[%s225 + $0xf0] sm:$0xff]
        %v259 = vld [vmem:[%s225 + $0xf8] sm:$0xff]
        %vm260 = vcmask 261120
        %261 = vst.msk [vmem:[#allocation2] sm:$0xff] %vm260, %v228
        %262 = vst.msk [vmem:[#allocation2 + $0x8] sm:$0xff] %vm260, %v229
        %263 = vst.msk [vmem:[#allocation2 + $0x10] sm:$0xff] %vm260, %v230
        %264 = vst.msk [vmem:[#allocation2 + $0x18] sm:$0xff] %vm260, %v231
        %265 = vst.msk [vmem:[#allocation2 + $0x20] sm:$0xff] %vm260, %v232
        %266 = vst.msk [vmem:[#allocation2 + $0x28] sm:$0xff] %vm260, %v233
        %267 = vst.msk [vmem:[#allocation2 + $0x30] sm:$0xff] %vm260, %v234
        %268 = vst.msk [vmem:[#allocation2 + $0x38] sm:$0xff] %vm260, %v235
        %269 = vst.msk [vmem:[#allocation2 + $0x40] sm:$0xff] %vm260, %v236
        %270 = vst.msk [vmem:[#allocation2 + $0x48] sm:$0xff] %vm260, %v237
        %271 = vst.msk [vmem:[#allocation2 + $0x50] sm:$0xff] %vm260, %v238
        %272 = vst.msk [vmem:[#allocation2 + $0x58] sm:$0xff] %vm260, %v239
        %273 = vst.msk [vmem:[#allocation2 + $0x60] sm:$0xff] %vm260, %v240
        %274 = vst.msk [vmem:[#allocation2 + $0x68] sm:$0xff] %vm260, %v241
        %275 = vst.msk [vmem:[#allocation2 + $0x70] sm:$0xff] %vm260, %v242
        %276 = vst.msk [vmem:[#allocation2 + $0x78] sm:$0xff] %vm260, %v243
        %277 = vst.msk [vmem:[#allocation2 + $0x80] sm:$0xff] %vm260, %v244
        %278 = vst.msk [vmem:[#allocation2 + $0x88] sm:$0xff] %vm260, %v245
        %279 = vst.msk [vmem:[#allocation2 + $0x90] sm:$0xff] %vm260, %v246
        %280 = vst.msk [vmem:[#allocation2 + $0x98] sm:$0xff] %vm260, %v247
        %281 = vst.msk [vmem:[#allocation2 + $0xa0] sm:$0xff] %vm260, %v248
        %282 = vst.msk [vmem:[#allocation2 + $0xa8] sm:$0xff] %vm260, %v249
        %283 = vst.msk [vmem:[#allocation2 + $0xb0] sm:$0xff] %vm260, %v250
        %284 = vst.msk [vmem:[#allocation2 + $0xb8] sm:$0xff] %vm260, %v251
        %285 = vst.msk [vmem:[#allocation2 + $0xc0] sm:$0xff] %vm260, %v252
        %286 = vst.msk [vmem:[#allocation2 + $0xc8] sm:$0xff] %vm260, %v253
        %287 = vst.msk [vmem:[#allocation2 + $0xd0] sm:$0xff] %vm260, %v254
        %288 = vst.msk [vmem:[#allocation2 + $0xd8] sm:$0xff] %vm260, %v255
        %289 = vst.msk [vmem:[#allocation2 + $0xe0] sm:$0xff] %vm260, %v256
        %290 = vst.msk [vmem:[#allocation2 + $0xe8] sm:$0xff] %vm260, %v257
        %291 = vst.msk [vmem:[#allocation2 + $0xf0] sm:$0xff] %vm260, %v258
        %292 = vst.msk [vmem:[#allocation2 + $0xf8] sm:$0xff] %vm260, %v259
        %v293 = vld [vmem:[#allocation2] sm:$0xff]
        %v294 = vld [vmem:[#allocation2 + $0x8] sm:$0xff]
        %v295 = vld [vmem:[#allocation2 + $0x10] sm:$0xff]
        %v296 = vld [vmem:[#allocation2 + $0x18] sm:$0xff]
        %v297 = vld [vmem:[#allocation2 + $0x20] sm:$0xff]
        %v298 = vld [vmem:[#allocation2 + $0x28] sm:$0xff]
        %v299 = vld [vmem:[#allocation2 + $0x30] sm:$0xff]
        %v300 = vld [vmem:[#allocation2 + $0x38] sm:$0xff]
        %v301 = vld [vmem:[#allocation2 + $0x40] sm:$0xff]
        %v302 = vld [vmem:[#allocation2 + $0x48] sm:$0xff]
        %v303 = vld [vmem:[#allocation2 + $0x50] sm:$0xff]
        %v304 = vld [vmem:[#allocation2 + $0x58] sm:$0xff]
        %v305 = vld [vmem:[#allocation2 + $0x60] sm:$0xff]
        %v306 = vld [vmem:[#allocation2 + $0x68] sm:$0xff]
        %v307 = vld [vmem:[#allocation2 + $0x70] sm:$0xff]
        %v308 = vld [vmem:[#allocation2 + $0x78] sm:$0xff]
        %v309 = vld [vmem:[#allocation2 + $0x80] sm:$0xff]
        %v310 = vld [vmem:[#allocation2 + $0x88] sm:$0xff]
        %v311 = vld [vmem:[#allocation2 + $0x90] sm:$0xff]
        %v312 = vld [vmem:[#allocation2 + $0x98] sm:$0xff]
        %v313 = vld [vmem:[#allocation2 + $0xa0] sm:$0xff]
        %v314 = vld [vmem:[#allocation2 + $0xa8] sm:$0xff]
        %v315 = vld [vmem:[#allocation2 + $0xb0] sm:$0xff]
        %v316 = vld [vmem:[#allocation2 + $0xb8] sm:$0xff]
        %v317 = vld [vmem:[#allocation2 + $0xc0] sm:$0xff]
        %v318 = vld [vmem:[#allocation2 + $0xc8] sm:$0xff]
        %v319 = vld [vmem:[#allocation2 + $0xd0] sm:$0xff]
        %v320 = vld [vmem:[#allocation2 + $0xd8] sm:$0xff]
        %v321 = vld [vmem:[#allocation2 + $0xe0] sm:$0xff]
        %v322 = vld [vmem:[#allocation2 + $0xe8] sm:$0xff]
        %v323 = vld [vmem:[#allocation2 + $0xf0] sm:$0xff]
        %v324 = vld [vmem:[#allocation2 + $0xf8] sm:$0xff]
        %325 = vxpose.xlu0.b32.start [1/16] %v293, 128
        %326 = vxpose.xlu0.b32.cont [2/16] %v294, 128
        %327 = vxpose.xlu0.b32.cont [3/16] %v295, 128
        %328 = vxpose.xlu0.b32.cont [4/16] %v296, 128
        %329 = vxpose.xlu0.b32.cont [5/16] %v297, 128
        %330 = vxpose.xlu0.b32.cont [6/16] %v298, 128
        %331 = vxpose.xlu0.b32.cont [7/16] %v299, 128
        %332 = vxpose.xlu0.b32.cont [8/16] %v300, 128
        %333 = vxpose.xlu0.b32.cont [9/16] %v301, 128
        %334 = vxpose.xlu0.b32.cont [10/16] %v302, 128
        %335 = vxpose.xlu0.b32.cont [11/16] %v303, 128
        %336 = vxpose.xlu0.b32.cont [12/16] %v304, 128
        %337 = vxpose.xlu0.b32.cont [13/16] %v305, 128
        %338 = vxpose.xlu0.b32.cont [14/16] %v306, 128
        %339 = vxpose.xlu0.b32.cont [15/16] %v307, 128
        %340 = vxpose.xlu0.b32.end [16/16] %v308, 128
        %v341 = vpop.trf.xlu0
        %v342 = vpop.trf.xlu0
        %v343 = vpop.trf.xlu0
        %v344 = vpop.trf.xlu0
        %v345 = vpop.trf.xlu0
        %v346 = vpop.trf.xlu0
        %v347 = vpop.trf.xlu0
        %v348 = vpop.trf.xlu0
        %v349 = vpop.trf.xlu0
        %v350 = vpop.trf.xlu0
        %v351 = vpop.trf.xlu0
        %v352 = vpop.trf.xlu0
        %v353 = vpop.trf.xlu0
        %v354 = vpop.trf.xlu0
        %v355 = vpop.trf.xlu0
        %v356 = vpop.trf.xlu0
        %357 = vxpose.xlu0.b32.start [1/16] %v309, 128
        %358 = vxpose.xlu0.b32.cont [2/16] %v310, 128
        %359 = vxpose.xlu0.b32.cont [3/16] %v311, 128
        %360 = vxpose.xlu0.b32.cont [4/16] %v312, 128
        %361 = vxpose.xlu0.b32.cont [5/16] %v313, 128
        %362 = vxpose.xlu0.b32.cont [6/16] %v314, 128
        %363 = vxpose.xlu0.b32.cont [7/16] %v315, 128
        %364 = vxpose.xlu0.b32.cont [8/16] %v316, 128
        %365 = vxpose.xlu0.b32.cont [9/16] %v317, 128
        %366 = vxpose.xlu0.b32.cont [10/16] %v318, 128
        %367 = vxpose.xlu0.b32.cont [11/16] %v319, 128
        %368 = vxpose.xlu0.b32.cont [12/16] %v320, 128
        %369 = vxpose.xlu0.b32.cont [13/16] %v321, 128
        %370 = vxpose.xlu0.b32.cont [14/16] %v322, 128
        %371 = vxpose.xlu0.b32.cont [15/16] %v323, 128
        %372 = vxpose.xlu0.b32.end [16/16] %v324, 128
        %v373 = vpop.trf.xlu0
        %v374 = vpop.trf.xlu0
        %v375 = vpop.trf.xlu0
        %v376 = vpop.trf.xlu0
        %v377 = vpop.trf.xlu0
        %v378 = vpop.trf.xlu0
        %v379 = vpop.trf.xlu0
        %v380 = vpop.trf.xlu0
        %v381 = vpop.trf.xlu0
        %v382 = vpop.trf.xlu0
        %v383 = vpop.trf.xlu0
        %v384 = vpop.trf.xlu0
        %v385 = vpop.trf.xlu0
        %v386 = vpop.trf.xlu0
        %v387 = vpop.trf.xlu0
        %v388 = vpop.trf.xlu0
        %v389 = vrot.slane %v341, 4
        %v390 = vmax.f32 %v341, %v389
        %v391 = vrot.slane %v390, 2
        %v392 = vmax.f32 %v390, %v391
        %v393 = vrot.slane %v392, 1
        %v394 = vmax.f32 %v392, %v393
        %v395 = vrot.slane %v373, 4
        %v396 = vmax.f32 %v373, %v395
        %v397 = vrot.slane %v396, 2
        %v398 = vmax.f32 %v396, %v397
        %v399 = vrot.slane %v398, 1
        %v400 = vmax.f32 %v398, %v399
        %v401 = vsub.f32 %v341, %v394
        %v402 = vsub.f32 %v373, %v400
        %v403 = vmul.f32 %v401, 1.442695
        %v404 = vpow.pop %v403
        %v405 = vmul.f32 %v402, 1.442695
        %v406 = vpow.pop %v405
        %v407 = vrot.slane %v404, 4
        %v408 = vadd.f32 %v404, %v407
        %v409 = vrot.slane %v408, 2
        %v410 = vadd.f32 %v408, %v409
        %v411 = vrot.slane %v410, 1
        %v412 = vadd.f32 %v410, %v411
        %v413 = vrot.slane %v406, 4
        %v414 = vadd.f32 %v406, %v413
        %v415 = vrot.slane %v414, 2
        %v416 = vadd.f32 %v414, %v415
        %v417 = vrot.slane %v416, 1
        %v418 = vadd.f32 %v416, %v417
        %v419 = vrcp.pop %v412
        %v420 = vrcp.pop %v418
        %v421 = vrot.slane %v401, 4
        %v422 = vmax.f32 %v401, %v421
        %v423 = vrot.slane %v422, 2
        %v424 = vmax.f32 %v422, %v423
        %v425 = vrot.slane %v424, 1
        %v426 = vmax.f32 %v424, %v425
        %v427 = vrot.slane %v402, 4
        %v428 = vmax.f32 %v402, %v427
        %v429 = vrot.slane %v428, 2
        %v430 = vmax.f32 %v428, %v429
        %v431 = vrot.slane %v430, 1
        %v432 = vmax.f32 %v430, %v431
        %vm433 = vcmp.eq.f32.partialorder %v401, %v426
        %vm434 = vcmp.eq.f32.partialorder %v402, %v432
        %v435 = vsel %vm433, -1e+30, %v401
        %v436 = vsel %vm434, -1e+30, %v402
        %v437 = vmul.f32 %v426, 1.442695
        %v438 = vpow.pop %v437
        %v439 = vmul.f32 %v432, 1.442695
        %v440 = vpow.pop %v439
        %v441 = vmul.f32 %v438, %v419
        %v442 = vmul.f32 %v440, %v420
        %v445 = vcombine.low %v441, %v442
        %v447 = vunpack.c.l.s4 1966171168
        %v448 = vunpack.c.0.s8 %v447
        %v449 = vlaneseq
        %v450 = vshrl.u32 %v449, 7
        %v451 = vsub.s32 %v448, %v450
        %v452 = vrot.slane %v445, %v451
        %v454 = vunpack.c.l.s4 1966171168
        %v455 = vunpack.c.0.s8 %v454
        %v456 = vlaneseq
        %v457 = vshrl.u32 %v456, 7
        %v458 = vsub.s32 %v455, %v457
        %v459 = vrot.slane %v452, %v458
        %v461 = vlaneseq
        %vm462 = vcmp.ge.s32.totalorder %v461, 0
        %vm463 = vcmp.lt.s32.totalorder %v461, 256
        %vm464 = vmand %vm462, %vm463
        %465 = vst.msk [vmem:[#allocation3] ss:$8 sm:$0x3] %vm464, %v459
        %466 = vst.msk [vmem:[#allocation3] ss:$8 sm:$0x0] %vm464, %v459
        %v467 = vrot.slane %v435, 4
        %v468 = vmax.f32 %v435, %v467
        %v469 = vrot.slane %v468, 2
        %v470 = vmax.f32 %v468, %v469
        %v471 = vrot.slane %v470, 1
        %v472 = vmax.f32 %v470, %v471
        %v473 = vrot.slane %v436, 4
        %v474 = vmax.f32 %v436, %v473
        %v475 = vrot.slane %v474, 2
        %v476 = vmax.f32 %v474, %v475
        %v477 = vrot.slane %v476, 1
        %v478 = vmax.f32 %v476, %v477
        %v479 = vmul.f32 %v472, 1.442695
        %v480 = vpow.pop %v479
        %v481 = vmul.f32 %v478, 1.442695
        %v482 = vpow.pop %v481
        %v483 = vmul.f32 %v480, %v419
        %v484 = vmul.f32 %v482, %v420
        %v487 = vcombine.low %v483, %v484
        %v489 = vunpack.c.l.s4 1966171168
        %v490 = vunpack.c.0.s8 %v489
        %v491 = vlaneseq
        %v492 = vshrl.u32 %v491, 7
        %v493 = vsub.s32 %v490, %v492
        %v494 = vrot.slane %v487, %v493
        %v496 = vunpack.c.l.s4 1966171168
        %v497 = vunpack.c.0.s8 %v496
        %v498 = vlaneseq
        %v499 = vshrl.u32 %v498, 7
        %v500 = vsub.s32 %v497, %v499
        %v501 = vrot.slane %v494, %v500
        %s503 = scalar_lea.vmem [#allocation3], 1
        %504 = vst.msk [vmem:[%s503] ss:$8 sm:$0x3] %vm464, %v501
        %505 = vst.msk [vmem:[%s503] ss:$8 sm:$0x0] %vm464, %v501
        %v506 = vrot.slane %v342, 4
        %v507 = vmax.f32 %v342, %v506
        %v508 = vrot.slane %v507, 2
        %v509 = vmax.f32 %v507, %v508
        %v510 = vrot.slane %v509, 1
        %v511 = vmax.f32 %v509, %v510
        %v512 = vrot.slane %v374, 4
        %v513 = vmax.f32 %v374, %v512
        %v514 = vrot.slane %v513, 2
        %v515 = vmax.f32 %v513, %v514
        %v516 = vrot.slane %v515, 1
        %v517 = vmax.f32 %v515, %v516
        %v518 = vsub.f32 %v342, %v511
        %v519 = vsub.f32 %v374, %v517
        %v520 = vmul.f32 %v518, 1.442695
        %v521 = vpow.pop %v520
        %v522 = vmul.f32 %v519, 1.442695
        %v523 = vpow.pop %v522
        %v524 = vrot.slane %v521, 4
        %v525 = vadd.f32 %v521, %v524
        %v526 = vrot.slane %v525, 2
        %v527 = vadd.f32 %v525, %v526
        %v528 = vrot.slane %v527, 1
        %v529 = vadd.f32 %v527, %v528
        %v530 = vrot.slane %v523, 4
        %v531 = vadd.f32 %v523, %v530
        %v532 = vrot.slane %v531, 2
        %v533 = vadd.f32 %v531, %v532
        %v534 = vrot.slane %v533, 1
        %v535 = vadd.f32 %v533, %v534
        %v536 = vrcp.pop %v529
        %v537 = vrcp.pop %v535
        %v538 = vrot.slane %v518, 4
        %v539 = vmax.f32 %v518, %v538
        %v540 = vrot.slane %v539, 2
        %v541 = vmax.f32 %v539, %v540
        %v542 = vrot.slane %v541, 1
        %v543 = vmax.f32 %v541, %v542
        %v544 = vrot.slane %v519, 4
        %v545 = vmax.f32 %v519, %v544
        %v546 = vrot.slane %v545, 2
        %v547 = vmax.f32 %v545, %v546
        %v548 = vrot.slane %v547, 1
        %v549 = vmax.f32 %v547, %v548
        %vm550 = vcmp.eq.f32.partialorder %v518, %v543
        %vm551 = vcmp.eq.f32.partialorder %v519, %v549
        %v552 = vsel %vm550, -1e+30, %v518
        %v553 = vsel %vm551, -1e+30, %v519
        %v554 = vmul.f32 %v543, 1.442695
        %v555 = vpow.pop %v554
        %v556 = vmul.f32 %v549, 1.442695
        %v557 = vpow.pop %v556
        %v558 = vmul.f32 %v555, %v536
        %v559 = vmul.f32 %v557, %v537
        %v562 = vcombine.low %v558, %v559
        %v564 = vunpack.c.l.s4 1966171168
        %v565 = vunpack.c.0.s8 %v564
        %v566 = vlaneseq
        %v567 = vshrl.u32 %v566, 7
        %v568 = vsub.s32 %v565, %v567
        %v569 = vrot.slane %v562, %v568
        %v571 = vunpack.c.l.s4 1966171168
        %v572 = vunpack.c.0.s8 %v571
        %v573 = vlaneseq
        %v574 = vshrl.u32 %v573, 7
        %v575 = vsub.s32 %v572, %v574
        %v576 = vrot.slane %v569, %v575
        %s578 = scalar_lea.vmem [#allocation3], 2
        %579 = vst.msk [vmem:[%s578] ss:$8 sm:$0x3] %vm464, %v576
        %580 = vst.msk [vmem:[%s578] ss:$8 sm:$0x0] %vm464, %v576
        %v581 = vrot.slane %v552, 4
        %v582 = vmax.f32 %v552, %v581
        %v583 = vrot.slane %v582, 2
        %v584 = vmax.f32 %v582, %v583
        %v585 = vrot.slane %v584, 1
        %v586 = vmax.f32 %v584, %v585
        %v587 = vrot.slane %v553, 4
        %v588 = vmax.f32 %v553, %v587
        %v589 = vrot.slane %v588, 2
        %v590 = vmax.f32 %v588, %v589
        %v591 = vrot.slane %v590, 1
        %v592 = vmax.f32 %v590, %v591
        %v593 = vmul.f32 %v586, 1.442695
        %v594 = vpow.pop %v593
        %v595 = vmul.f32 %v592, 1.442695
        %v596 = vpow.pop %v595
        %v597 = vmul.f32 %v594, %v536
        %v598 = vmul.f32 %v596, %v537
        %v601 = vcombine.low %v597, %v598
        %v603 = vunpack.c.l.s4 1966171168
        %v604 = vunpack.c.0.s8 %v603
        %v605 = vlaneseq
        %v606 = vshrl.u32 %v605, 7
        %v607 = vsub.s32 %v604, %v606
        %v608 = vrot.slane %v601, %v607
        %v610 = vunpack.c.l.s4 1966171168
        %v611 = vunpack.c.0.s8 %v610
        %v612 = vlaneseq
        %v613 = vshrl.u32 %v612, 7
        %v614 = vsub.s32 %v611, %v613
        %v615 = vrot.slane %v608, %v614
        %s617 = scalar_lea.vmem [#allocation3], 3
        %618 = vst.msk [vmem:[%s617] ss:$8 sm:$0x3] %vm464, %v615
        %619 = vst.msk [vmem:[%s617] ss:$8 sm:$0x0] %vm464, %v615
        %v620 = vrot.slane %v343, 4
        %v621 = vmax.f32 %v343, %v620
        %v622 = vrot.slane %v621, 2
        %v623 = vmax.f32 %v621, %v622
        %v624 = vrot.slane %v623, 1
        %v625 = vmax.f32 %v623, %v624
        %v626 = vrot.slane %v375, 4
        %v627 = vmax.f32 %v375, %v626
        %v628 = vrot.slane %v627, 2
        %v629 = vmax.f32 %v627, %v628
        %v630 = vrot.slane %v629, 1
        %v631 = vmax.f32 %v629, %v630
        %v632 = vsub.f32 %v343, %v625
        %v633 = vsub.f32 %v375, %v631
        %v634 = vmul.f32 %v632, 1.442695
        %v635 = vpow.pop %v634
        %v636 = vmul.f32 %v633, 1.442695
        %v637 = vpow.pop %v636
        %v638 = vrot.slane %v635, 4
        %v639 = vadd.f32 %v635, %v638
        %v640 = vrot.slane %v639, 2
        %v641 = vadd.f32 %v639, %v640
        %v642 = vrot.slane %v641, 1
        %v643 = vadd.f32 %v641, %v642
        %v644 = vrot.slane %v637, 4
        %v645 = vadd.f32 %v637, %v644
        %v646 = vrot.slane %v645, 2
        %v647 = vadd.f32 %v645, %v646
        %v648 = vrot.slane %v647, 1
        %v649 = vadd.f32 %v647, %v648
        %v650 = vrcp.pop %v643
        %v651 = vrcp.pop %v649
        %v652 = vrot.slane %v632, 4
        %v653 = vmax.f32 %v632, %v652
        %v654 = vrot.slane %v653, 2
        %v655 = vmax.f32 %v653, %v654
        %v656 = vrot.slane %v655, 1
        %v657 = vmax.f32 %v655, %v656
        %v658 = vrot.slane %v633, 4
        %v659 = vmax.f32 %v633, %v658
        %v660 = vrot.slane %v659, 2
        %v661 = vmax.f32 %v659, %v660
        %v662 = vrot.slane %v661, 1
        %v663 = vmax.f32 %v661, %v662
        %vm664 = vcmp.eq.f32.partialorder %v632, %v657
        %vm665 = vcmp.eq.f32.partialorder %v633, %v663
        %v666 = vsel %vm664, -1e+30, %v632
        %v667 = vsel %vm665, -1e+30, %v633
        %v668 = vmul.f32 %v657, 1.442695
        %v669 = vpow.pop %v668
        %v670 = vmul.f32 %v663, 1.442695
        %v671 = vpow.pop %v670
        %v672 = vmul.f32 %v669, %v650
        %v673 = vmul.f32 %v671, %v651
        %v676 = vcombine.low %v672, %v673
        %v678 = vunpack.c.l.s4 1966171168
        %v679 = vunpack.c.0.s8 %v678
        %v680 = vlaneseq
        %v681 = vshrl.u32 %v680, 7
        %v682 = vsub.s32 %v679, %v681
        %v683 = vrot.slane %v676, %v682
        %v685 = vunpack.c.l.s4 1966171168
        %v686 = vunpack.c.0.s8 %v685
        %v687 = vlaneseq
        %v688 = vshrl.u32 %v687, 7
        %v689 = vsub.s32 %v686, %v688
        %v690 = vrot.slane %v683, %v689
        %s692 = scalar_lea.vmem [#allocation3], 4
        %693 = vst.msk [vmem:[%s692] ss:$8 sm:$0x3] %vm464, %v690
        %694 = vst.msk [vmem:[%s692] ss:$8 sm:$0x0] %vm464, %v690
        %v695 = vrot.slane %v666, 4
        %v696 = vmax.f32 %v666, %v695
        %v697 = vrot.slane %v696, 2
        %v698 = vmax.f32 %v696, %v697
        %v699 = vrot.slane %v698, 1
        %v700 = vmax.f32 %v698, %v699
        %v701 = vrot.slane %v667, 4
        %v702 = vmax.f32 %v667, %v701
        %v703 = vrot.slane %v702, 2
        %v704 = vmax.f32 %v702, %v703
        %v705 = vrot.slane %v704, 1
        %v706 = vmax.f32 %v704, %v705
        %v707 = vmul.f32 %v700, 1.442695
        %v708 = vpow.pop %v707
        %v709 = vmul.f32 %v706, 1.442695
        %v710 = vpow.pop %v709
        %v711 = vmul.f32 %v708, %v650
        %v712 = vmul.f32 %v710, %v651
        %v715 = vcombine.low %v711, %v712
        %v717 = vunpack.c.l.s4 1966171168
        %v718 = vunpack.c.0.s8 %v717
        %v719 = vlaneseq
        %v720 = vshrl.u32 %v719, 7
        %v721 = vsub.s32 %v718, %v720
        %v722 = vrot.slane %v715, %v721
        %v724 = vunpack.c.l.s4 1966171168
        %v725 = vunpack.c.0.s8 %v724
        %v726 = vlaneseq
        %v727 = vshrl.u32 %v726, 7
        %v728 = vsub.s32 %v725, %v727
        %v729 = vrot.slane %v722, %v728
        %s731 = scalar_lea.vmem [#allocation3], 5
        %732 = vst.msk [vmem:[%s731] ss:$8 sm:$0x3] %vm464, %v729
        %733 = vst.msk [vmem:[%s731] ss:$8 sm:$0x0] %vm464, %v729
        %v734 = vrot.slane %v344, 4
        %v735 = vmax.f32 %v344, %v734
        %v736 = vrot.slane %v735, 2
        %v737 = vmax.f32 %v735, %v736
        %v738 = vrot.slane %v737, 1
        %v739 = vmax.f32 %v737, %v738
        %v740 = vrot.slane %v376, 4
        %v741 = vmax.f32 %v376, %v740
        %v742 = vrot.slane %v741, 2
        %v743 = vmax.f32 %v741, %v742
        %v744 = vrot.slane %v743, 1
        %v745 = vmax.f32 %v743, %v744
        %v746 = vsub.f32 %v344, %v739
        %v747 = vsub.f32 %v376, %v745
        %v748 = vmul.f32 %v746, 1.442695
        %v749 = vpow.pop %v748
        %v750 = vmul.f32 %v747, 1.442695
        %v751 = vpow.pop %v750
        %v752 = vrot.slane %v749, 4
        %v753 = vadd.f32 %v749, %v752
        %v754 = vrot.slane %v753, 2
        %v755 = vadd.f32 %v753, %v754
        %v756 = vrot.slane %v755, 1
        %v757 = vadd.f32 %v755, %v756
        %v758 = vrot.slane %v751, 4
        %v759 = vadd.f32 %v751, %v758
        %v760 = vrot.slane %v759, 2
        %v761 = vadd.f32 %v759, %v760
        %v762 = vrot.slane %v761, 1
        %v763 = vadd.f32 %v761, %v762
        %v764 = vrcp.pop %v757
        %v765 = vrcp.pop %v763
        %v766 = vrot.slane %v746, 4
        %v767 = vmax.f32 %v746, %v766
        %v768 = vrot.slane %v767, 2
        %v769 = vmax.f32 %v767, %v768
        %v770 = vrot.slane %v769, 1
        %v771 = vmax.f32 %v769, %v770
        %v772 = vrot.slane %v747, 4
        %v773 = vmax.f32 %v747, %v772
        %v774 = vrot.slane %v773, 2
        %v775 = vmax.f32 %v773, %v774
        %v776 = vrot.slane %v775, 1
        %v777 = vmax.f32 %v775, %v776
        %vm778 = vcmp.eq.f32.partialorder %v746, %v771
        %vm779 = vcmp.eq.f32.partialorder %v747, %v777
        %v780 = vsel %vm778, -1e+30, %v746
        %v781 = vsel %vm779, -1e+30, %v747
        %v782 = vmul.f32 %v771, 1.442695
        %v783 = vpow.pop %v782
        %v784 = vmul.f32 %v777, 1.442695
        %v785 = vpow.pop %v784
        %v786 = vmul.f32 %v783, %v764
        %v787 = vmul.f32 %v785, %v765
        %v790 = vcombine.low %v786, %v787
        %v792 = vunpack.c.l.s4 1966171168
        %v793 = vunpack.c.0.s8 %v792
        %v794 = vlaneseq
        %v795 = vshrl.u32 %v794, 7
        %v796 = vsub.s32 %v793, %v795
        %v797 = vrot.slane %v790, %v796
        %v799 = vunpack.c.l.s4 1966171168
        %v800 = vunpack.c.0.s8 %v799
        %v801 = vlaneseq
        %v802 = vshrl.u32 %v801, 7
        %v803 = vsub.s32 %v800, %v802
        %v804 = vrot.slane %v797, %v803
        %s806 = scalar_lea.vmem [#allocation3], 6
        %807 = vst.msk [vmem:[%s806] ss:$8 sm:$0x3] %vm464, %v804
        %808 = vst.msk [vmem:[%s806] ss:$8 sm:$0x0] %vm464, %v804
        %v809 = vrot.slane %v780, 4
        %v810 = vmax.f32 %v780, %v809
        %v811 = vrot.slane %v810, 2
        %v812 = vmax.f32 %v810, %v811
        %v813 = vrot.slane %v812, 1
        %v814 = vmax.f32 %v812, %v813
        %v815 = vrot.slane %v781, 4
        %v816 = vmax.f32 %v781, %v815
        %v817 = vrot.slane %v816, 2
        %v818 = vmax.f32 %v816, %v817
        %v819 = vrot.slane %v818, 1
        %v820 = vmax.f32 %v818, %v819
        %v821 = vmul.f32 %v814, 1.442695
        %v822 = vpow.pop %v821
        %v823 = vmul.f32 %v820, 1.442695
        %v824 = vpow.pop %v823
        %v825 = vmul.f32 %v822, %v764
        %v826 = vmul.f32 %v824, %v765
        %v829 = vcombine.low %v825, %v826
        %v831 = vunpack.c.l.s4 1966171168
        %v832 = vunpack.c.0.s8 %v831
        %v833 = vlaneseq
        %v834 = vshrl.u32 %v833, 7
        %v835 = vsub.s32 %v832, %v834
        %v836 = vrot.slane %v829, %v835
        %v838 = vunpack.c.l.s4 1966171168
        %v839 = vunpack.c.0.s8 %v838
        %v840 = vlaneseq
        %v841 = vshrl.u32 %v840, 7
        %v842 = vsub.s32 %v839, %v841
        %v843 = vrot.slane %v836, %v842
        %s845 = scalar_lea.vmem [#allocation3], 7
        %846 = vst.msk [vmem:[%s845] ss:$8 sm:$0x3] %vm464, %v843
        %847 = vst.msk [vmem:[%s845] ss:$8 sm:$0x0] %vm464, %v843
        %v848 = vld [vmem:[#allocation3] sm:$0xff]
        %v849 = vld [vmem:[#allocation3 + $0x8] sm:$0xff]
        %v850 = vld [vmem:[%s1] sm:$0xff]
        %v851 = vld [vmem:[%s1 + $0x8] sm:$0xff]
        %v852 = vld [vmem:[%s1 + $0x10] sm:$0xff]
        %v853 = vld [vmem:[%s1 + $0x18] sm:$0xff]
        %v854 = vld [vmem:[%s2] sm:$0xff]
        %v855 = vld [vmem:[%s2 + $0x8] sm:$0xff]
        %v856 = vld [vmem:[%s2 + $0x10] sm:$0xff]
        %v857 = vld [vmem:[%s2 + $0x18] sm:$0xff]
        %859 = vset.pattern.permute.xlu0 0
        %860 = vperm.xlu0 %859, %v854
        %v861 = vpop.permute.xlu0 %860
        %864 = vset.pattern.permute.xlu0 0
        %865 = vperm.xlu0 %864, %v855
        %v866 = vpop.permute.xlu0 %865
        %869 = vset.pattern.permute.xlu0 0
        %870 = vperm.xlu0 %869, %v856
        %v871 = vpop.permute.xlu0 %870
        %874 = vset.pattern.permute.xlu0 0
        %875 = vperm.xlu0 %874, %v857
        %v876 = vpop.permute.xlu0 %875
        %vm878 = vcmask 64512
        %v880 = vsel %vm878, %v850, 0
        %v883 = vsel %vm878, %v851, 0
        %v886 = vsel %vm878, %v852, 0
        %v889 = vsel %vm878, %v853, 0
        %891 = vmatprep.subr.mxu0 %v849
        %892 = vmatpush1.msra.mxu0 %v848
        %893 = vmatprep.subr.mxu0 0.0
        %894 = vmatpush1.msra.mxu0 0.0
        %895 = vmatprep.subr.mxu0 0.0
        %896 = vmatpush1.msra.mxu0 0.0
        %897 = vmatprep.subr.mxu0 0.0
        %898 = vmatpush1.msra.mxu0 0.0
        %899 = vmatprep.subr.mxu0 0.0
        %900 = vmatpush1.msra.mxu0 0.0
        %901 = vmatprep.subr.mxu0 0.0
        %902 = vmatpush1.msra.mxu0 0.0
        %903 = vmatprep.subr.mxu0 0.0
        %904 = vmatpush1.msra.mxu0 0.0
        %905 = vmatprep.subr.mxu0 0.0
        %906 = vmatpush1.msra.mxu0 0.0
        %907 = vmatprep.subr.mxu0 0.0
        %908 = vmatpush1.msra.mxu0 0.0
        %909 = vmatprep.subr.mxu0 0.0
        %910 = vmatpush1.msra.mxu0 0.0
        %911 = vmatprep.subr.mxu0 0.0
        %912 = vmatpush1.msra.mxu0 0.0
        %913 = vmatprep.subr.mxu0 0.0
        %914 = vmatpush1.msra.mxu0 0.0
        %915 = vmatprep.subr.mxu0 0.0
        %916 = vmatpush1.msra.mxu0 0.0
        %917 = vmatprep.subr.mxu0 0.0
        %918 = vmatpush1.msra.mxu0 0.0
        %919 = vmatprep.subr.mxu0 0.0
        %920 = vmatpush1.msra.mxu0 0.0
        %921 = vmatprep.subr.mxu0 0.0
        %922 = vmatpush1.msra.mxu0 0.0
        %923 = vmatprep.subr.mxu0 0.0
        %924 = vmatpush1.msra.mxu0 0.0
        %925 = vmatprep.subr.mxu0 0.0
        %926 = vmatpush1.msra.mxu0 0.0
        %927 = vmatprep.subr.mxu0 0.0
        %928 = vmatpush1.msra.mxu0 0.0
        %929 = vmatprep.subr.mxu0 0.0
        %930 = vmatpush1.msra.mxu0 0.0
        %931 = vmatprep.subr.mxu0 0.0
        %932 = vmatpush1.msra.mxu0 0.0
        %933 = vmatprep.subr.mxu0 0.0
        %934 = vmatpush1.msra.mxu0 0.0
        %935 = vmatprep.subr.mxu0 0.0
        %936 = vmatpush1.msra.mxu0 0.0
        %937 = vmatprep.subr.mxu0 0.0
        %938 = vmatpush1.msra.mxu0 0.0
        %939 = vmatprep.subr.mxu0 0.0
        %940 = vmatpush1.msra.mxu0 0.0
        %941 = vmatprep.subr.mxu0 0.0
        %942 = vmatpush1.msra.mxu0 0.0
        %943 = vmatprep.subr.mxu0 0.0
        %944 = vmatpush1.msra.mxu0 0.0
        %945 = vmatprep.subr.mxu0 0.0
        %946 = vmatpush1.msra.mxu0 0.0
        %947 = vmatprep.subr.mxu0 0.0
        %948 = vmatpush1.msra.mxu0 0.0
        %949 = vmatprep.subr.mxu0 0.0
        %950 = vmatpush1.msra.mxu0 0.0
        %951 = vmatprep.subr.mxu0 0.0
        %952 = vmatpush1.msra.mxu0 0.0
        %953 = vmatprep.subr.mxu0 0.0
        %954 = vmatpush1.msra.mxu0 0.0
        %955 = vmatprep.mubr.f32.mxu0 0.0
        %956 = vmatmul.mubr.f32.gmra.mrb[0].mxu0 %v880
        %v957 = vpop.f32.mrb[0].mxu0
        %v958 = vadd.f32 %v861, %v957
        %v959 = vpop.f32.mrb[0].mxu0
        %v960 = vadd.f32 %v861, %v959
        %961 = vmatprep.mubr.f32.mxu0 0.0
        %962 = vmatmul.mubr.f32.gmra.mrb[0].mxu0 %v883
        %v963 = vpop.f32.mrb[0].mxu0
        %v964 = vadd.f32 %v866, %v963
        %v965 = vpop.f32.mrb[0].mxu0
        %v966 = vadd.f32 %v866, %v965
        %967 = vmatprep.mubr.f32.mxu0 0.0
        %968 = vmatmul.mubr.f32.gmra.mrb[0].mxu0 %v886
        %v969 = vpop.f32.mrb[0].mxu0
        %v970 = vadd.f32 %v871, %v969
        %v971 = vpop.f32.mrb[0].mxu0
        %v972 = vadd.f32 %v871, %v971
        %973 = vmatprep.mubr.f32.mxu0 0.0
        %974 = vmatmul.mubr.f32.gmra.mrb[0].mxu0 %v889
        %v975 = vpop.f32.mrb[0].mxu0
        %v976 = vadd.f32 %v876, %v975
        %v977 = vpop.f32.mrb[0].mxu0
        %v978 = vadd.f32 %v876, %v977
        %979 = vdwg.mxu0
        %v980 = vmax.f32 %v958, 0.0
        %v981 = vmax.f32 %v960, 0.0
        %v982 = vmax.f32 %v964, 0.0
        %v983 = vmax.f32 %v966, 0.0
        %v984 = vmax.f32 %v970, 0.0
        %v985 = vmax.f32 %v972, 0.0
        %v986 = vmax.f32 %v976, 0.0
        %v987 = vmax.f32 %v978, 0.0
        %v988 = vld [vmem:[%s3] sm:$0x1]
        %v989 = vld [vmem:[#allocation4] sm:$0x1]
        %991 = vset.pattern.permute.xlu0 0
        %992 = vperm.xlu0 %991, %v989
        %v993 = vpop.permute.xlu0 %992
        %v995 = vlaneseq
        %v996 = vshrl.u32 %v995, 7
        %v997 = vsub.s32 0, %v996
        %v998 = vrot.slane %v993, %v997
        %v1000 = vsel %vm260, %v988, 0
        %1002 = vmatprep.subr.mxu0 %v981
        %1003 = vmatpush1.msra.mxu0 %v980
        %1004 = vmatprep.subr.mxu0 %v983
        %1005 = vmatpush1.msra.mxu0 %v982
        %1006 = vmatprep.subr.mxu0 %v985
        %1007 = vmatpush1.msra.mxu0 %v984
        %1008 = vmatprep.subr.mxu0 %v987
        %1009 = vmatpush1.msra.mxu0 %v986
        %1010 = vmatprep.subr.mxu0 0.0
        %1011 = vmatpush1.msra.mxu0 0.0
        %1012 = vmatprep.subr.mxu0 0.0
        %1013 = vmatpush1.msra.mxu0 0.0
        %1014 = vmatprep.subr.mxu0 0.0
        %1015 = vmatpush1.msra.mxu0 0.0
        %1016 = vmatprep.subr.mxu0 0.0
        %1017 = vmatpush1.msra.mxu0 0.0
        %1018 = vmatprep.subr.mxu0 0.0
        %1019 = vmatpush1.msra.mxu0 0.0
        %1020 = vmatprep.subr.mxu0 0.0
        %1021 = vmatpush1.msra.mxu0 0.0
        %1022 = vmatprep.subr.mxu0 0.0
        %1023 = vmatpush1.msra.mxu0 0.0
        %1024 = vmatprep.subr.mxu0 0.0
        %1025 = vmatpush1.msra.mxu0 0.0
        %1026 = vmatprep.subr.mxu0 0.0
        %1027 = vmatpush1.msra.mxu0 0.0
        %1028 = vmatprep.subr.mxu0 0.0
        %1029 = vmatpush1.msra.mxu0 0.0
        %1030 = vmatprep.subr.mxu0 0.0
        %1031 = vmatpush1.msra.mxu0 0.0
        %1032 = vmatprep.subr.mxu0 0.0
        %1033 = vmatpush1.msra.mxu0 0.0
        %1034 = vmatprep.subr.mxu0 0.0
        %1035 = vmatpush1.msra.mxu0 0.0
        %1036 = vmatprep.subr.mxu0 0.0
        %1037 = vmatpush1.msra.mxu0 0.0
        %1038 = vmatprep.subr.mxu0 0.0
        %1039 = vmatpush1.msra.mxu0 0.0
        %1040 = vmatprep.subr.mxu0 0.0
        %1041 = vmatpush1.msra.mxu0 0.0
        %1042 = vmatprep.subr.mxu0 0.0
        %1043 = vmatpush1.msra.mxu0 0.0
        %1044 = vmatprep.subr.mxu0 0.0
        %1045 = vmatpush1.msra.mxu0 0.0
        %1046 = vmatprep.subr.mxu0 0.0
        %1047 = vmatpush1.msra.mxu0 0.0
        %1048 = vmatprep.subr.mxu0 0.0
        %1049 = vmatpush1.msra.mxu0 0.0
        %1050 = vmatprep.subr.mxu0 0.0
        %1051 = vmatpush1.msra.mxu0 0.0
        %1052 = vmatprep.subr.mxu0 0.0
        %1053 = vmatpush1.msra.mxu0 0.0
        %1054 = vmatprep.subr.mxu0 0.0
        %1055 = vmatpush1.msra.mxu0 0.0
        %1056 = vmatprep.subr.mxu0 0.0
        %1057 = vmatpush1.msra.mxu0 0.0
        %1058 = vmatprep.subr.mxu0 0.0
        %1059 = vmatpush1.msra.mxu0 0.0
        %1060 = vmatprep.subr.mxu0 0.0
        %1061 = vmatpush1.msra.mxu0 0.0
        %1062 = vmatprep.subr.mxu0 0.0
        %1063 = vmatpush1.msra.mxu0 0.0
        %1064 = vmatprep.subr.mxu0 0.0
        %1065 = vmatpush1.msra.mxu0 0.0
        %1066 = vmatprep.mubr.f32.mxu0 0.0
        %1067 = vmatmul.mubr.f32.gmra.mrb[0].mxu0 %v1000
        %v1068 = vpop.f32.mrb[0].mxu0
        %v1069 = vadd.f32 %v998, %v1068
        %v1070 = vpop.f32.mrb[0].mxu0
        %v1071 = vadd.f32 %v998, %v1070
        %1072 = vdwg.mxu0
        %v1075 = vcombine.low %v1069, %v1071
        %v1077 = vunpack.c.l.s4 1966171168
        %v1078 = vunpack.c.0.s8 %v1077
        %v1079 = vlaneseq
        %v1080 = vshrl.u32 %v1079, 7
        %v1081 = vsub.s32 %v1078, %v1080
        %v1082 = vrot.slane %v1075, %v1081
        %v1084 = vunpack.c.l.s4 1966171168
        %v1085 = vunpack.c.0.s8 %v1084
        %v1086 = vlaneseq
        %v1087 = vshrl.u32 %v1086, 7
        %v1088 = vsub.s32 %v1085, %v1087
        %v1089 = vrot.slane %v1082, %v1088
        %1091 = vst.msk [vmem:[%s220] sm:$0x3] %vm464, %v1089
        %s1092 = sand.u32 %s139, 1
        %s1093 = scalar_lea.sflag [#allocation6], %s1092
        %s1094 = sand.u32 %s139, 1
        %s1095 = smul.addr %s1094, 2
        %s1096 = scalar_lea.vmem [#allocation5], %s1095
        // Predicated region
        $region41: #{tpu_custom_call.1} parent=39 // pred_check
          %p1097 = pneg %p149
        $region42: #{tpu_custom_call.1} parent=39 // pred_check_branch
          %1099 = sbr.rel (%p1097) target = $region44
        $region43: #{tpu_custom_call.1} parent=39 // pred_region
          %s1100 = smul.u32 2, %s21
          %s1102 = ssub.s32 32, 32
          %1103 = vsyncadd %s1093, %s1102
          %s1104 = smul.addr %s1100, 16
          %s1105 = scalar_lea.hbm %s5, %s1104
          %s1107 = sshll.u32 %s1096, 4
          %s1108 = int_to_ptr.vmem [resolvable:$true] %s1107
          %1110 = dma.vmem_to_hbm [thread:$0]  %s1108, 32, %s1105, %s1093
        $region44: #{tpu_custom_call.1} parent=39 // pred_fallthru
          _
      $region40: #{tpu_custom_call.1} parent=5 // pred_fallthru
        _
      %p1111 = scmp.le.s32.totalorder 2, %s16
      // Predicated region
      $region45: #{tpu_custom_call.1} parent=5 // pred_check
        %p1112 = pneg %p1111
      $region46: #{tpu_custom_call.1} parent=5 // pred_check_branch
        %1114 = sbr.rel (%p1112) target = $region48
      $region47: #{tpu_custom_call.1} parent=5 // pred_region
        %s1115 = ssub.s32 %s16, 2
        // Predicated region
        $region49: #{tpu_custom_call.1} parent=47 // pred_check
          %p1116 = pneg %p155
        $region50: #{tpu_custom_call.1} parent=47 // pred_check_branch
          %1118 = sbr.rel (%p1116) target = $region52
        $region51: #{tpu_custom_call.1} parent=47 // pred_region
          %s1119 = sand.u32 %s140, 1
          %s1120 = scalar_lea.sflag [#allocation6], %s1119
          %s1121 = sand.u32 %s140, 1
          %s1122 = smul.addr %s1121, 2
          %s1123 = scalar_lea.vmem [#allocation5], %s1122
          %1124 = dma.done %s1120, 32
        $region52: #{tpu_custom_call.1} parent=47 // pred_fallthru
          _
      $region48: #{tpu_custom_call.1} parent=5 // pred_fallthru
        _
    $region6: #{tpu_custom_call.1} parent=1 // loop_footer
      %s20 = sadd.s32 1, %s16
    $region7: #{tpu_custom_call.1} parent=1 // loop_footer_branch
      %15 = sbr.rel target = $region3
    $region8: #{tpu_custom_call.1} parent=1 // loop_exit
      _
    %1125 = vsyncpa [#allocation6], 1
    %s1126 = scalar_lea.sflag [#allocation6], 1
    %1127 = vsyncpa %s1126, 1

</llo_original>
